<compile_context>
chip_gen: v6e
topology: v6e:2x2x1
jax: 0.10.0
libtpu: 0.0.40
codegen_flags: <defaults>
</compile_context>

<pallas_src>
import functools

import jax
import jax.numpy as jnp
from jax import lax
from jax.experimental import pallas as pl
from jax.experimental.pallas import tpu as pltpu

BN_EPS = 1e-5


def _vmem_limit_bytes():
    """Scoped-VMEM budget derived from the physical VMEM of the current chip."""
    try:
        cap = int(pltpu.get_tpu_info().vmem_capacity_bytes)
    except Exception:  # unknown target / interpret mode
        cap = 64 * 1024 * 1024
    return max(16 * 1024 * 1024, min(cap // 2, 96 * 1024 * 1024))


# ----------------------------- Pallas kernels -----------------------------

def _conv1_kernel(x_ref, w_ref, y_ref, sum_ref, ssq_ref, *scratch,
                  stride, bt, ho, wo, cin, cout):
    """3x3 conv as ONE MXU dot over a packed (rows, 9*Cin) tap buffer + partial stats.

    stride == 1 : x_ref is the raw (bt, H, W, Cin) image; zero-pad into VMEM scratch.
    stride == 2 : x_ref is (bt, Hp, Wp, 4*Cin) — zero-padded and phase-packed along
                  channels in the wrapper, so every tap is a static slice.
    """
    rows = bt * ho * wo
    if stride == 1:
        xpad_ref, tap_ref = scratch
        xpad_ref[...] = jnp.zeros(xpad_ref.shape, xpad_ref.dtype)
        xpad_ref[:, 1:ho + 1, 1:wo + 1, :] = x_ref[...]
        xp = xpad_ref[...]
        for dh in range(3):
            for dw in range(3):
                t = dh * 3 + dw
                tap = xp[:, dh:dh + ho, dw:dw + wo, :]
                tap_ref[:, t * cin:(t + 1) * cin] = tap.reshape(rows, cin)
    else:  # stride == 2
        (tap_ref,) = scratch
        xv = x_ref[...]                                    # (bt, Hp, Wp, 4*cin)
        for dh in range(3):
            for dw in range(3):
                t = dh * 3 + dw
                p = (dh % 2) * 2 + (dw % 2)
                oh, ow = dh // 2, dw // 2
                tap = xv[:, oh:oh + ho, ow:ow + wo, p * cin:(p + 1) * cin]
                tap_ref[:, t * cin:(t + 1) * cin] = tap.reshape(rows, cin)

    acc = jnp.dot(tap_ref[...], w_ref[...], preferred_element_type=jnp.float32)
    y_ref[...] = acc.reshape(bt, ho, wo, cout)
    # Per-step partial statistics (combined in the wrapper) -> grid axis stays "parallel".
    sum_ref[...] = jnp.sum(acc, axis=0, keepdims=True).reshape(1, 1, cout)
    ssq_ref[...] = jnp.sum(acc * acc, axis=0, keepdims=True).reshape(1, 1, cout)


def _conv2_kernel(y1_ref, w_ref, scale_ref, shift_ref, a_ref,
                  y_ref, sum_ref, ssq_ref, pad_ref, tap_ref, *, bt, ho, wo, c):
    """BN1 affine + PReLU, zero-pad into VMEM scratch, 3x3 conv2 (one dot) + partial stats."""
    rows = bt * ho * wo
    alpha = a_ref[0]
    y1 = y1_ref[...] * scale_ref[...] + shift_ref[...]     # (bt, ho, wo, c)
    y1 = jnp.where(y1 > 0, y1, alpha * y1)

    pad_ref[...] = jnp.zeros(pad_ref.shape, pad_ref.dtype)
    pad_ref[:, 1:ho + 1, 1:wo + 1, :] = y1
    yp = pad_ref[...]
    for dh in range(3):
        for dw in range(3):
            t = dh * 3 + dw
            tap = yp[:, dh:dh + ho, dw:dw + wo, :]
            tap_ref[:, t * c:(t + 1) * c] = tap.reshape(rows, c)

    acc = jnp.dot(tap_ref[...], w_ref[...], preferred_element_type=jnp.float32)
    y_ref[...] = acc.reshape(bt, ho, wo, c)
    sum_ref[...] = jnp.sum(acc, axis=0, keepdims=True).reshape(1, 1, c)
    ssq_ref[...] = jnp.sum(acc * acc, axis=0, keepdims=True).reshape(1, 1, c)


def _bn_add_prelu_kernel(yc_ref, id_ref, scale_ref, shift_ref, a_ref, out_ref):
    """BN2 affine + residual add + PReLU on lane-dense (rows, 128) blocks."""
    alpha = a_ref[0]
    y = yc_ref[...] * scale_ref[...] + shift_ref[...] + id_ref[...]
    out_ref[...] = jnp.where(y > 0, y, alpha * y)


# --------------------------- pallas_call wrappers ---------------------------

def _pick_batch_tile(n, bytes_per_image, vmem_limit):
    """Images per grid step: ~MiB-scale blocks, largest divisor of the batch."""
    target = min(4 << 20, max(vmem_limit // 16, 1 << 20))
    bt = max(1, min(n, target // max(bytes_per_image, 1)))
    while n % bt:
        bt -= 1
    return int(bt)


def _conv1_call(x_in, w_flat, stride, n, ho, wo, bt, vmem_limit):
    cin = w_flat.shape[0] // 9
    cout = w_flat.shape[1]
    nsteps = n // bt
    rows = bt * ho * wo
    h_in, w_in, c_in_packed = x_in.shape[1], x_in.shape[2], x_in.shape[3]
    if stride == 1:
        scratch = [pltpu.VMEM((bt, h_in + 2, w_in + 2, cin), jnp.float32),
                   pltpu.VMEM((rows, 9 * cin), jnp.float32)]
    else:
        scratch = [pltpu.VMEM((rows, 9 * cin), jnp.float32)]
    kernel = functools.partial(_conv1_kernel, stride=stride, bt=bt,
                               ho=ho, wo=wo, cin=cin, cout=cout)
    return pl.pallas_call(
        kernel,
        out_shape=(jax.ShapeDtypeStruct((n, ho, wo, cout), jnp.float32),
                   jax.ShapeDtypeStruct((nsteps, 1, cout), jnp.float32),
                   jax.ShapeDtypeStruct((nsteps, 1, cout), jnp.float32)),
        grid=(nsteps,),
        in_specs=[pl.BlockSpec((bt, h_in, w_in, c_in_packed), lambda i: (i, 0, 0, 0)),
                  pl.BlockSpec((9 * cin, cout), lambda i: (0, 0))],
        out_specs=(pl.BlockSpec((bt, ho, wo, cout), lambda i: (i, 0, 0, 0)),
                   pl.BlockSpec((1, 1, cout), lambda i: (i, 0, 0)),
                   pl.BlockSpec((1, 1, cout), lambda i: (i, 0, 0))),
        scratch_shapes=scratch,
        compiler_params=pltpu.CompilerParams(
            dimension_semantics=("parallel",),
            vmem_limit_bytes=vmem_limit),
    )(x_in, w_flat)


def _conv2_call(y1c, w_flat, scale1, shift1, a, bt, vmem_limit):
    n, ho, wo, c = y1c.shape
    nsteps = n // bt
    rows = bt * ho * wo
    kernel = functools.partial(_conv2_kernel, bt=bt, ho=ho, wo=wo, c=c)
    return pl.pallas_call(
        kernel,
        out_shape=(jax.ShapeDtypeStruct((n, ho, wo, c), jnp.float32),
                   jax.ShapeDtypeStruct((nsteps, 1, c), jnp.float32),
                   jax.ShapeDtypeStruct((nsteps, 1, c), jnp.float32)),
        grid=(nsteps,),
        in_specs=[pl.BlockSpec((bt, ho, wo, c), lambda i: (i, 0, 0, 0)),
                  pl.BlockSpec((9 * c, c), lambda i: (0, 0)),
                  pl.BlockSpec((1, c), lambda i: (0, 0)),
                  pl.BlockSpec((1, c), lambda i: (0, 0)),
                  pl.BlockSpec(memory_space=pltpu.MemorySpace.SMEM)],
        out_specs=(pl.BlockSpec((bt, ho, wo, c), lambda i: (i, 0, 0, 0)),
                   pl.BlockSpec((1, 1, c), lambda i: (i, 0, 0)),
                   pl.BlockSpec((1, 1, c), lambda i: (i, 0, 0))),
        scratch_shapes=[pltpu.VMEM((bt, ho + 2, wo + 2, c), jnp.float32),
                        pltpu.VMEM((rows, 9 * c), jnp.float32)],
        compiler_params=pltpu.CompilerParams(
            dimension_semantics=("parallel",),
            vmem_limit_bytes=vmem_limit),
    )(y1c, w_flat, scale1, shift1, a)


def _row_tile(p2):
    """Rows-per-block for the lane-dense elementwise kernel (~<=0.5 MiB/block)."""
    if p2 <= 1024:
        return p2, p2
    for t in (1024, 512, 256, 128):
        if p2 % t == 0:
            return t, p2
    t = 512
    return t, ((p2 + t - 1) // t) * t


def _bn_add_prelu_call(y_flat, id_flat, scale, shift, a, vmem_limit):
    p, c = y_flat.shape
    # Fold g spatial rows into the lane axis so the last dim is 128 (full vst).
    g = (128 // c) if (c <= 128 and 128 % c == 0) else 1
    lanes = g * c
    p2 = -(-p // g)
    if p2 * g != p:
        extra = p2 * g - p
        y_flat = jnp.pad(y_flat, ((0, extra), (0, 0)))
        id_flat = jnp.pad(id_flat, ((0, extra), (0, 0)))
    yd = y_flat.reshape(p2, lanes)
    idd = id_flat.reshape(p2, lanes)
    scale_d = jnp.tile(scale, (1, g))
    shift_d = jnp.tile(shift, (1, g))
    tile, p2_pad = _row_tile(p2)
    if p2_pad != p2:
        yd = jnp.pad(yd, ((0, p2_pad - p2), (0, 0)))
        idd = jnp.pad(idd, ((0, p2_pad - p2), (0, 0)))
    out = pl.pallas_call(
        _bn_add_prelu_kernel,
        out_shape=jax.ShapeDtypeStruct((p2_pad, lanes), jnp.float32),
        grid=(p2_pad // tile,),
        in_specs=[pl.BlockSpec((tile, lanes), lambda i: (i, 0)),
                  pl.BlockSpec((tile, lanes), lambda i: (i, 0)),
                  pl.BlockSpec((1, lanes), lambda i: (0, 0)),
                  pl.BlockSpec((1, lanes), lambda i: (0, 0)),
                  pl.BlockSpec(memory_space=pltpu.MemorySpace.SMEM)],
        out_specs=pl.BlockSpec((tile, lanes), lambda i: (i, 0)),
        compiler_params=pltpu.CompilerParams(
            dimension_semantics=("parallel",),
            vmem_limit_bytes=vmem_limit),
    )(yd, idd, scale_d, shift_d, a)
    return out.reshape(p2_pad * g, c)[:p]


# ------------------------------ glue (layout) ------------------------------

def _w_flat(w):
    """PyTorch (Cout, Cin, 3, 3) -> (9*Cin, Cout); row index = (kh*3+kw)*Cin + cin."""
    c_out, c_in = w.shape[0], w.shape[1]
    return jnp.transpose(w, (2, 3, 1, 0)).reshape(9 * c_in, c_out)


def _bn_affine(s_parts, q_parts, gamma, beta, count):
    """Fold batch-statistic BN into a per-channel affine (y = x*scale + shift)."""
    s = jnp.sum(s_parts, axis=(0, 1))
    q = jnp.sum(q_parts, axis=(0, 1))
    mean = s / count
    # clamp guards the E[x^2] - mean^2 form from dipping slightly negative
    var = jnp.maximum(q / count - mean * mean, 0.0)
    inv = lax.rsqrt(var + BN_EPS)
    scale = gamma * inv
    shift = beta - mean * scale
    return scale.reshape(1, -1), shift.reshape(1, -1)


def res_block_forward(x_nchw, params, in_channel, out_channel):
    n, c, h, w = x_nchw.shape
    assert c == in_channel
    x = jnp.transpose(x_nchw, (0, 2, 3, 1)).astype(jnp.float32)      # NHWC
    gamma, beta, a = params["bn_gamma"], params["bn_beta"], params["prelu_a"]
    vmem_limit = _vmem_limit_bytes()

    if in_channel == out_channel:
        stride, ho, wo = 1, h, w
        w1 = params["conv1_w"]
        x_in = x                              # raw image; zero-pad happens in-kernel
        identity = x.reshape(n * ho * wo, out_channel)
    else:
        stride, ho, wo = 2, h // 2, w // 2
        w1 = params["conv1s_w"]
        # MaxPool2d(2,2) + zero channel extension for the residual path.
        pooled = jnp.maximum(jnp.maximum(x[:, 0::2, 0::2, :], x[:, 0::2, 1::2, :]),
                             jnp.maximum(x[:, 1::2, 0::2, :], x[:, 1::2, 1::2, :]))
        identity = jnp.pad(pooled, ((0, 0), (0, 0), (0, 0),
                                    (0, out_channel - in_channel)))
        identity = identity.reshape(n * ho * wo, out_channel)
        # Pad + phase split fused into one wrapper op; the 4 phases are packed
        # along channels so the kernel sees lane-denser 4-D blocks and every
        # strided tap becomes a static slice.
        x_pad = jnp.pad(x, ((0, 0), (1, 1), (1, 1), (0, 0)))
        x_in = jnp.concatenate([x_pad[:, ai::2, bi::2, :]
                                for ai in range(2) for bi in range(2)], axis=-1)

    in_bytes = int(x_in.shape[1]) * int(x_in.shape[2]) * int(x_in.shape[3]) * 4
    mid_bytes = ho * wo * out_channel * 4
    bt = _pick_batch_tile(n, max(in_bytes, mid_bytes), vmem_limit)

    # conv1 (bias dropped: cancels under batch-stat BN) + per-step partial stats.
    y1c, s1, q1 = _conv1_call(x_in, _w_flat(w1), stride, n, ho, wo, bt, vmem_limit)
    count = n * ho * wo
    scale1, shift1 = _bn_affine(s1, q1, gamma, beta, count)

    # BN1 + PReLU fused into conv2 (+ per-step partial stats for BN2).
    y2c, s2, q2 = _conv2_call(y1c, _w_flat(params["conv2_w"]),
                              scale1, shift1, a, bt, vmem_limit)
    scale2, shift2 = _bn_affine(s2, q2, gamma, beta, count)

    # BN2 + residual add + PReLU, lane-dense over P = N*Ho*Wo rows.
    out = _bn_add_prelu_call(y2c.reshape(count, out_channel), identity,
                             scale2, shift2, a, vmem_limit)
    return jnp.transpose(out.reshape(n, ho, wo, out_channel), (0, 3, 1, 2))  # NCHW


# ---------------------------- pure-JAX reference ----------------------------

def res_block_reference(x, params, in_channel, out_channel):
    gamma, beta, a = params["bn_gamma"], params["bn_beta"], params["prelu_a"]

    def conv(x, w, b, stride):
        y = lax.conv_general_dilated(x, w, (stride, stride), ((1, 1), (1, 1)),
                                     dimension_numbers=("NCHW", "OIHW", "NCHW"))
        return y + b[None, :, None, None]

    def bn(x):
        m = jnp.mean(x, axis=(0, 2, 3), keepdims=True)
        v = jnp.mean((x - m) ** 2, axis=(0, 2, 3), keepdims=True)
        return ((x - m) / jnp.sqrt(v + BN_EPS)) * gamma[None, :, None, None] \
            + beta[None, :, None, None]

    def prelu(x):
        return jnp.where(x > 0, x, a * x)

    if in_channel == out_channel:
        identity = x
        y = prelu(bn(conv(x, params["conv1_w"], params["conv1_b"], 1)))
    else:
        pooled = lax.reduce_window(x, -jnp.inf, lax.max,
                                   (1, 1, 2, 2), (1, 1, 2, 2), "VALID")
        identity = jnp.concatenate([pooled, jnp.zeros_like(pooled)], axis=1)
        y = prelu(bn(conv(x, params["conv1s_w"], params["conv1s_b"], 2)))
    y = bn(conv(y, params["conv2_w"], params["conv2_b"], 1))
    return prelu(y + identity)


# --------------------------- deterministic params ---------------------------

def init_params(key, in_channel, out_channel):
    ks = jax.random.split(key, 6)

    def u(k, shape, fan_in):
        bound = 1.0 / jnp.sqrt(jnp.float32(fan_in))
        return jax.random.uniform(k, shape, jnp.float32, -bound, bound)

    fan1 = in_channel * 9
    fan2 = out_channel * 9
    return {
        "conv1_w": u(ks[0], (out_channel, in_channel, 3, 3), fan1),
        "conv1_b": u(ks[1], (out_channel,), fan1),
        "conv1s_w": u(ks[2], (out_channel, in_channel, 3, 3), fan1),
        "conv1s_b": u(ks[3], (out_channel,), fan1),
        "conv2_w": u(ks[4], (out_channel, out_channel, 3, 3), fan2),
        "conv2_b": u(ks[5], (out_channel,), fan2),
        "bn_gamma": jnp.ones((out_channel,), jnp.float32),   # BatchNorm2d defaults
        "bn_beta": jnp.zeros((out_channel,), jnp.float32),
        "prelu_a": jnp.full((1,), 0.25, jnp.float32),         # PReLU default init
    }


if __name__ == "__main__":
    key = jax.random.PRNGKey(0)
    k_x, k_p = jax.random.split(key)

    # downsampling branch: in_channel != out_channel (out = 2*in as the module assumes)
    batch, in_channel, out_channel, size = 2, 4, 8, 16
    params = init_params(k_p, in_channel, out_channel)
    x = jax.random.normal(k_x, (batch, in_channel, size, size), jnp.float32)
    out = jax.block_until_ready(res_block_forward(x, params, in_channel, out_channel))
    ref = res_block_reference(x, params, in_channel, out_channel)
    assert out.shape == (batch, out_channel, size // 2, size // 2)
    assert jnp.allclose(out, ref, atol=1e-3, rtol=1e-3), \
        float(jnp.max(jnp.abs(out - ref)))

    # identity branch: in_channel == out_channel
    params_eq = init_params(jax.random.PRNGKey(1), out_channel, out_channel)
    x_eq = jax.random.normal(jax.random.PRNGKey(2),
                             (batch, out_channel, size, size), jnp.float32)
    out_eq = jax.block_until_ready(
        res_block_forward(x_eq, params_eq, out_channel, out_channel))
    ref_eq = res_block_reference(x_eq, params_eq, out_channel, out_channel)
    assert out_eq.shape == (batch, out_channel, size, size)
    assert jnp.allclose(out_eq, ref_eq, atol=1e-3, rtol=1e-3), \
        float(jnp.max(jnp.abs(out_eq - ref_eq)))

    print("KERNEL_OK")
</pallas_src>

<mosaic_0001>
module attributes {stable_mosaic.version = 11 : i64} {
  func.func @_conv1_kernel(%arg0: i32, %arg1: memref<2x9x9x16xf32, #tpu.memory_space<vmem>>, %arg2: memref<36x8xf32, #tpu.memory_space<vmem>>, %arg3: memref<2x8x8x8xf32, #tpu.memory_space<vmem>>, %arg4: memref<1x1x8xf32, #tpu.memory_space<vmem>>, %arg5: memref<1x1x8xf32, #tpu.memory_space<vmem>>, %arg6: memref<128x36xf32, #tpu.memory_space<vmem>>) attributes {dimension_semantics = [#tpu.dimension_semantics<parallel>], iteration_bounds = array<i64: 1>, scalar_prefetch = 0 : i64, scratch_operands = 1 : i64, tpu.core_type = #tpu.core_type<tc>, window_params = [{transform_indices = @transform_0, window_bounds = array<i64: 2, 9, 9, 16>}, {pipeline_mode = #tpu.pipeline_mode<synchronous>, transform_indices = @transform_1, window_bounds = array<i64: 36, 8>}, {transform_indices = @transform_2, window_bounds = array<i64: 2, 8, 8, 8>}, {transform_indices = @transform_3, window_bounds = array<i64: 1, 1, 8>}, {transform_indices = @transform_4, window_bounds = array<i64: 1, 1, 8>}]} {
    %c0 = arith.constant 0 : index
    %c0_0 = arith.constant 0 : index
    %c0_1 = arith.constant 0 : index
    %c0_2 = arith.constant 0 : index
    %0 = vector.load %arg1[%c0, %c0_0, %c0_1, %c0_2] : memref<2x9x9x16xf32, #tpu.memory_space<vmem>>, vector<2x9x9x16xf32>
    %1 = vector.extract_strided_slice %0 {offsets = [0, 0, 0, 0], sizes = [2, 8, 8, 4], strides = [1, 1, 1, 1]} : vector<2x9x9x16xf32> to vector<2x8x8x4xf32>
    %2 = vector.shape_cast %1 : vector<2x8x8x4xf32> to vector<128x4xf32>
    %c0_3 = arith.constant 0 : index
    %c0_4 = arith.constant 0 : index
    %3 = vector.load %arg6[%c0_3, %c0_4] : memref<128x36xf32, #tpu.memory_space<vmem>>, vector<128x4xf32>
    tpu.vector_store %arg6[%c0_3, %c0_4], %2 {strides = array<i32>} : memref<128x36xf32, #tpu.memory_space<vmem>>, vector<128x4xf32>,
    %4 = vector.extract_strided_slice %0 {offsets = [0, 0, 0, 4], sizes = [2, 8, 8, 4], strides = [1, 1, 1, 1]} : vector<2x9x9x16xf32> to vector<2x8x8x4xf32>
    %5 = vector.shape_cast %4 : vector<2x8x8x4xf32> to vector<128x4xf32>
    %c0_5 = arith.constant 0 : index
    %c4 = arith.constant 4 : index
    %6 = vector.load %arg6[%c0_5, %c4] : memref<128x36xf32, #tpu.memory_space<vmem>>, vector<128x4xf32>
    tpu.vector_store %arg6[%c0_5, %c4], %5 {strides = array<i32>} : memref<128x36xf32, #tpu.memory_space<vmem>>, vector<128x4xf32>,
    %7 = vector.extract_strided_slice %0 {offsets = [0, 0, 1, 0], sizes = [2, 8, 8, 4], strides = [1, 1, 1, 1]} : vector<2x9x9x16xf32> to vector<2x8x8x4xf32>
    %8 = vector.shape_cast %7 : vector<2x8x8x4xf32> to vector<128x4xf32>
    %c0_6 = arith.constant 0 : index
    %c8 = arith.constant 8 : index
    %9 = vector.load %arg6[%c0_6, %c8] : memref<128x36xf32, #tpu.memory_space<vmem>>, vector<128x4xf32>
    tpu.vector_store %arg6[%c0_6, %c8], %8 {strides = array<i32>} : memref<128x36xf32, #tpu.memory_space<vmem>>, vector<128x4xf32>,
    %10 = vector.extract_strided_slice %0 {offsets = [0, 0, 0, 8], sizes = [2, 8, 8, 4], strides = [1, 1, 1, 1]} : vector<2x9x9x16xf32> to vector<2x8x8x4xf32>
    %11 = vector.shape_cast %10 : vector<2x8x8x4xf32> to vector<128x4xf32>
    %c0_7 = arith.constant 0 : index
    %c12 = arith.constant 12 : index
    %12 = vector.load %arg6[%c0_7, %c12] : memref<128x36xf32, #tpu.memory_space<vmem>>, vector<128x4xf32>
    tpu.vector_store %arg6[%c0_7, %c12], %11 {strides = array<i32>} : memref<128x36xf32, #tpu.memory_space<vmem>>, vector<128x4xf32>,
    %13 = vector.extract_strided_slice %0 {offsets = [0, 0, 0, 12], sizes = [2, 8, 8, 4], strides = [1, 1, 1, 1]} : vector<2x9x9x16xf32> to vector<2x8x8x4xf32>
    %14 = vector.shape_cast %13 : vector<2x8x8x4xf32> to vector<128x4xf32>
    %c0_8 = arith.constant 0 : index
    %c16 = arith.constant 16 : index
    %15 = vector.load %arg6[%c0_8, %c16] : memref<128x36xf32, #tpu.memory_space<vmem>>, vector<128x4xf32>
    tpu.vector_store %arg6[%c0_8, %c16], %14 {strides = array<i32>} : memref<128x36xf32, #tpu.memory_space<vmem>>, vector<128x4xf32>,
    %16 = vector.extract_strided_slice %0 {offsets = [0, 0, 1, 8], sizes = [2, 8, 8, 4], strides = [1, 1, 1, 1]} : vector<2x9x9x16xf32> to vector<2x8x8x4xf32>
    %17 = vector.shape_cast %16 : vector<2x8x8x4xf32> to vector<128x4xf32>
    %c0_9 = arith.constant 0 : index
    %c20 = arith.constant 20 : index
    %18 = vector.load %arg6[%c0_9, %c20] : memref<128x36xf32, #tpu.memory_space<vmem>>, vector<128x4xf32>
    tpu.vector_store %arg6[%c0_9, %c20], %17 {strides = array<i32>} : memref<128x36xf32, #tpu.memory_space<vmem>>, vector<128x4xf32>,
    %19 = vector.extract_strided_slice %0 {offsets = [0, 1, 0, 0], sizes = [2, 8, 8, 4], strides = [1, 1, 1, 1]} : vector<2x9x9x16xf32> to vector<2x8x8x4xf32>
    %20 = vector.shape_cast %19 : vector<2x8x8x4xf32> to vector<128x4xf32>
    %c0_10 = arith.constant 0 : index
    %c24 = arith.constant 24 : index
    %21 = vector.load %arg6[%c0_10, %c24] : memref<128x36xf32, #tpu.memory_space<vmem>>, vector<128x4xf32>
    tpu.vector_store %arg6[%c0_10, %c24], %20 {strides = array<i32>} : memref<128x36xf32, #tpu.memory_space<vmem>>, vector<128x4xf32>,
    %22 = vector.extract_strided_slice %0 {offsets = [0, 1, 0, 4], sizes = [2, 8, 8, 4], strides = [1, 1, 1, 1]} : vector<2x9x9x16xf32> to vector<2x8x8x4xf32>
    %23 = vector.shape_cast %22 : vector<2x8x8x4xf32> to vector<128x4xf32>
    %c0_11 = arith.constant 0 : index
    %c28 = arith.constant 28 : index
    %24 = vector.load %arg6[%c0_11, %c28] : memref<128x36xf32, #tpu.memory_space<vmem>>, vector<128x4xf32>
    tpu.vector_store %arg6[%c0_11, %c28], %23 {strides = array<i32>} : memref<128x36xf32, #tpu.memory_space<vmem>>, vector<128x4xf32>,
    %25 = vector.extract_strided_slice %0 {offsets = [0, 1, 1, 0], sizes = [2, 8, 8, 4], strides = [1, 1, 1, 1]} : vector<2x9x9x16xf32> to vector<2x8x8x4xf32>
    %26 = vector.shape_cast %25 : vector<2x8x8x4xf32> to vector<128x4xf32>
    %c0_12 = arith.constant 0 : index
    %c32 = arith.constant 32 : index
    %27 = vector.load %arg6[%c0_12, %c32] : memref<128x36xf32, #tpu.memory_space<vmem>>, vector<128x4xf32>
    tpu.vector_store %arg6[%c0_12, %c32], %26 {strides = array<i32>} : memref<128x36xf32, #tpu.memory_space<vmem>>, vector<128x4xf32>,
    %c0_13 = arith.constant 0 : index
    %c0_14 = arith.constant 0 : index
    %28 = vector.load %arg6[%c0_13, %c0_14] : memref<128x36xf32, #tpu.memory_space<vmem>>, vector<128x36xf32>
    %c0_15 = arith.constant 0 : index
    %c0_16 = arith.constant 0 : index
    %29 = vector.load %arg2[%c0_15, %c0_16] : memref<36x8xf32, #tpu.memory_space<vmem>>, vector<36x8xf32>
    %cst = arith.constant dense<0.000000e+00> : vector<128x8xf32>
    %30 = tpu.matmul %28, %29, %cst {dimension_numbers = #tpu.dot_dimension_numbers<[1], [0], [0], [1], [0, 0, 1, 1], [], []>} : vector<128x36xf32>, vector<36x8xf32>, vector<128x8xf32> -> vector<128x8xf32>
    %31 = vector.shape_cast %30 : vector<128x8xf32> to vector<2x8x8x8xf32>
    %c0_17 = arith.constant 0 : index
    %c0_18 = arith.constant 0 : index
    %c0_19 = arith.constant 0 : index
    %c0_20 = arith.constant 0 : index
    %32 = vector.load %arg3[%c0_17, %c0_18, %c0_19, %c0_20] : memref<2x8x8x8xf32, #tpu.memory_space<vmem>>, vector<2x8x8x8xf32>
    tpu.vector_store %arg3[%c0_17, %c0_18, %c0_19, %c0_20], %31 {strides = array<i32>} : memref<2x8x8x8xf32, #tpu.memory_space<vmem>>, vector<2x8x8x8xf32>,
    %cst_21 = arith.constant dense<0.000000e+00> : vector<8xf32>
    %33 = vector.multi_reduction <add>, %30, %cst_21 [0] : vector<128x8xf32> to vector<8xf32>
    %34 = vector.shape_cast %33 : vector<8xf32> to vector<1x8xf32>
    %35 = vector.shape_cast %34 : vector<1x8xf32> to vector<1x1x8xf32>
    %c0_22 = arith.constant 0 : index
    %c0_23 = arith.constant 0 : index
    %c0_24 = arith.constant 0 : index
    %36 = vector.load %arg4[%c0_22, %c0_23, %c0_24] : memref<1x1x8xf32, #tpu.memory_space<vmem>>, vector<1x1x8xf32>
    tpu.vector_store %arg4[%c0_22, %c0_23, %c0_24], %35 {strides = array<i32>} : memref<1x1x8xf32, #tpu.memory_space<vmem>>, vector<1x1x8xf32>,
    %37 = arith.mulf %30, %30 : vector<128x8xf32>
    %cst_25 = arith.constant dense<0.000000e+00> : vector<8xf32>
    %38 = vector.multi_reduction <add>, %37, %cst_25 [0] : vector<128x8xf32> to vector<8xf32>
    %39 = vector.shape_cast %38 : vector<8xf32> to vector<1x8xf32>
    %40 = vector.shape_cast %39 : vector<1x8xf32> to vector<1x1x8xf32>
    %c0_26 = arith.constant 0 : index
    %c0_27 = arith.constant 0 : index
    %c0_28 = arith.constant 0 : index
    %41 = vector.load %arg5[%c0_26, %c0_27, %c0_28] : memref<1x1x8xf32, #tpu.memory_space<vmem>>, vector<1x1x8xf32>
    tpu.vector_store %arg5[%c0_26, %c0_27, %c0_28], %40 {strides = array<i32>} : memref<1x1x8xf32, #tpu.memory_space<vmem>>, vector<1x1x8xf32>,
    return
  }
  func.func @transform_0(%arg0: i32) -> (i32, i32, i32, i32) {
    %c0_i32 = arith.constant 0 : i32
    %c0_i32_0 = arith.constant 0 : i32
    %c0_i32_1 = arith.constant 0 : i32
    %c0_i32_2 = arith.constant 0 : i32
    return %arg0, %c0_i32, %c0_i32_0, %c0_i32_1 : i32, i32, i32, i32
  }
  func.func @transform_1(%arg0: i32) -> (i32, i32) {
    %c0_i32 = arith.constant 0 : i32
    %c0_i32_0 = arith.constant 0 : i32
    %c0_i32_1 = arith.constant 0 : i32
    return %c0_i32, %c0_i32_0 : i32, i32
  }
  func.func @transform_2(%arg0: i32) -> (i32, i32, i32, i32) {
    %c0_i32 = arith.constant 0 : i32
    %c0_i32_0 = arith.constant 0 : i32
    %c0_i32_1 = arith.constant 0 : i32
    %c0_i32_2 = arith.constant 0 : i32
    return %arg0, %c0_i32, %c0_i32_0, %c0_i32_1 : i32, i32, i32, i32
  }
  func.func @transform_3(%arg0: i32) -> (i32, i32, i32) {
    %c0_i32 = arith.constant 0 : i32
    %c0_i32_0 = arith.constant 0 : i32
    %c0_i32_1 = arith.constant 0 : i32
    return %arg0, %c0_i32, %c0_i32_0 : i32, i32, i32
  }
  func.func @transform_4(%arg0: i32) -> (i32, i32, i32) {
    %c0_i32 = arith.constant 0 : i32
    %c0_i32_0 = arith.constant 0 : i32
    %c0_i32_1 = arith.constant 0 : i32
    return %arg0, %c0_i32, %c0_i32_0 : i32, i32, i32
  }
}

</mosaic_0001>

<llo_original>
// kernel: tpu_custom_call.1
$region0: #{tpu_custom_call.1}
  #allocation0 [shape = 'u32[]', space=smem, size = 0x4, offset = 0x4, fixed_abs, tag = 'smem constant byte address 0x4 - core index']
  #allocation1 [shape = 'u32[144,128]{1,0:T(1,128)}', space=vmem, size = 0x12000, scoped, tag = 'internal scratch']
  #allocation2 [shape = 'f32[128,36]{1,0:T(8,128)}', space=vmem, size = 0x10000, scoped, tag = 'scratch operand']
  %s0 = inlined_call_operand.vmem [shape: f32[2,9,9,16], index: 0, kind: input, shape index: {}]
  %s1 = inlined_call_operand.vmem [shape: f32[36,8], index: 1, kind: input, shape index: {}]
  %s2 = inlined_call_operand.hbm [shape: f32[2,8,8,8], index: 2, kind: output, shape index: {0}]
  %s3 = inlined_call_operand.hbm [shape: f32[1,1,8], index: 3, kind: output, shape index: {1}]
  %s4 = inlined_call_operand.hbm [shape: f32[1,1,8], index: 4, kind: output, shape index: {2}]
  %5 = xla_tuple %s2, %s3, %s4
  %s6 = sld [smem:[#allocation0]]
  $region34: #{tpu_custom_call.1} parent=0
    _
  %s8 = ssub.s32 1, %s6
  %s9 = scalar_select 0, %s8, %s6
  $region1: #{tpu_custom_call.1} parent=0
    #allocation3 [shape = 'u8[65536]{0}', space=vmem, size = 0x10000, scoped, tag = 'output window, operand 0, single buffered']
    #allocation4 [shape = 's32[1]{0}', space=sflag, size = 0x4, scoped, tag = 'scoped memory for tpu_custom_call.1']
    #allocation5 [shape = 'u8[512]{0}', space=vmem, size = 0x400, scoped, tag = 'output window, operand 1, single buffered']
    #allocation6 [shape = 's32[1]{0}', space=sflag, size = 0x4, scoped, tag = 'scoped memory for tpu_custom_call.1']
    #allocation7 [shape = 'u8[512]{0}', space=vmem, size = 0x400, scoped, tag = 'output window, operand 2, single buffered']
    %10 = vsyncpa [#allocation4], 0
    %11 = vsyncpa [#allocation6], 0
    // Predicated region
    $region2: #{tpu_custom_call.1} parent=1 // pred_check
      _
    $region3: #{tpu_custom_call.1} parent=1 // pred_check_branch
      %13 = sbr.rel (0) target = $region5
    $region4: #{tpu_custom_call.1} parent=1 // pred_region
      _
    $region5: #{tpu_custom_call.1} parent=1 // pred_fallthru
      _
    // Predicated region
    $region6: #{tpu_custom_call.1} parent=1 // pred_check
      _
    $region7: #{tpu_custom_call.1} parent=1 // pred_check_branch
      %15 = sbr.rel (0) target = $region9
    $region8: #{tpu_custom_call.1} parent=1 // pred_region
      _
    $region9: #{tpu_custom_call.1} parent=1 // pred_fallthru
      _
    %v16 = vld [vmem:[%s0] sm:$0xff]
    %v17 = vld [vmem:[%s0 + $0x8] sm:$0x1]
    %v18 = vld [vmem:[%s0 + $0x10] sm:$0xff]
    %v19 = vld [vmem:[%s0 + $0x18] sm:$0x1]
    %v20 = vld [vmem:[%s0 + $0x20] sm:$0xff]
    %v21 = vld [vmem:[%s0 + $0x28] sm:$0x1]
    %v22 = vld [vmem:[%s0 + $0x30] sm:$0xff]
    %v23 = vld [vmem:[%s0 + $0x38] sm:$0x1]
    %v24 = vld [vmem:[%s0 + $0x40] sm:$0xff]
    %v25 = vld [vmem:[%s0 + $0x48] sm:$0x1]
    %v26 = vld [vmem:[%s0 + $0x50] sm:$0xff]
    %v27 = vld [vmem:[%s0 + $0x58] sm:$0x1]
    %v28 = vld [vmem:[%s0 + $0x60] sm:$0xff]
    %v29 = vld [vmem:[%s0 + $0x68] sm:$0x1]
    %v30 = vld [vmem:[%s0 + $0x70] sm:$0xff]
    %v31 = vld [vmem:[%s0 + $0x78] sm:$0x1]
    %v32 = vld [vmem:[%s0 + $0x80] sm:$0xff]
    %v33 = vld [vmem:[%s0 + $0x88] sm:$0x1]
    %v34 = vld [vmem:[%s0 + $0x90] sm:$0xff]
    %v35 = vld [vmem:[%s0 + $0x98] sm:$0x1]
    %v36 = vld [vmem:[%s0 + $0xa0] sm:$0xff]
    %v37 = vld [vmem:[%s0 + $0xa8] sm:$0x1]
    %v38 = vld [vmem:[%s0 + $0xb0] sm:$0xff]
    %v39 = vld [vmem:[%s0 + $0xb8] sm:$0x1]
    %v40 = vld [vmem:[%s0 + $0xc0] sm:$0xff]
    %v41 = vld [vmem:[%s0 + $0xc8] sm:$0x1]
    %v42 = vld [vmem:[%s0 + $0xd0] sm:$0xff]
    %v43 = vld [vmem:[%s0 + $0xd8] sm:$0x1]
    %v44 = vld [vmem:[%s0 + $0xe0] sm:$0xff]
    %v45 = vld [vmem:[%s0 + $0xe8] sm:$0x1]
    %v46 = vld [vmem:[%s0 + $0xf0] sm:$0xff]
    %v47 = vld [vmem:[%s0 + $0xf8] sm:$0x1]
    %v48 = vld [vmem:[%s0 + $0x100] sm:$0xff]
    %v49 = vld [vmem:[%s0 + $0x108] sm:$0x1]
    %v50 = vld [vmem:[%s0 + $0x110] sm:$0xff]
    %v51 = vld [vmem:[%s0 + $0x118] sm:$0x1]
    %vm52 = vcmask 31744
    %53 = vst.msk [vmem:[#allocation2] sm:$0xff] %vm52, %v16
    %54 = vst.msk [vmem:[#allocation2 + $0x8] sm:$0xff] %vm52, %v18
    %55 = vst.msk [vmem:[#allocation2 + $0x10] sm:$0xff] %vm52, %v20
    %56 = vst.msk [vmem:[#allocation2 + $0x18] sm:$0xff] %vm52, %v22
    %57 = vst.msk [vmem:[#allocation2 + $0x20] sm:$0xff] %vm52, %v24
    %58 = vst.msk [vmem:[#allocation2 + $0x28] sm:$0xff] %vm52, %v26
    %59 = vst.msk [vmem:[#allocation2 + $0x30] sm:$0xff] %vm52, %v28
    %60 = vst.msk [vmem:[#allocation2 + $0x38] sm:$0xff] %vm52, %v30
    %61 = vst.msk [vmem:[#allocation2 + $0x40] sm:$0xff] %vm52, %v34
    %62 = vst.msk [vmem:[#allocation2 + $0x48] sm:$0xff] %vm52, %v36
    %63 = vst.msk [vmem:[#allocation2 + $0x50] sm:$0xff] %vm52, %v38
    %64 = vst.msk [vmem:[#allocation2 + $0x58] sm:$0xff] %vm52, %v40
    %65 = vst.msk [vmem:[#allocation2 + $0x60] sm:$0xff] %vm52, %v42
    %66 = vst.msk [vmem:[#allocation2 + $0x68] sm:$0xff] %vm52, %v44
    %67 = vst.msk [vmem:[#allocation2 + $0x70] sm:$0xff] %vm52, %v46
    %68 = vst.msk [vmem:[#allocation2 + $0x78] sm:$0xff] %vm52, %v48
    %vm69 = vcmask 64544
    %70 = vst.msk [vmem:[#allocation2] sm:$0xff] %vm69, %v16
    %71 = vst.msk [vmem:[#allocation2 + $0x8] sm:$0xff] %vm69, %v18
    %72 = vst.msk [vmem:[#allocation2 + $0x10] sm:$0xff] %vm69, %v20
    %73 = vst.msk [vmem:[#allocation2 + $0x18] sm:$0xff] %vm69, %v22
    %74 = vst.msk [vmem:[#allocation2 + $0x20] sm:$0xff] %vm69, %v24
    %75 = vst.msk [vmem:[#allocation2 + $0x28] sm:$0xff] %vm69, %v26
    %76 = vst.msk [vmem:[#allocation2 + $0x30] sm:$0xff] %vm69, %v28
    %77 = vst.msk [vmem:[#allocation2 + $0x38] sm:$0xff] %vm69, %v30
    %78 = vst.msk [vmem:[#allocation2 + $0x40] sm:$0xff] %vm69, %v34
    %79 = vst.msk [vmem:[#allocation2 + $0x48] sm:$0xff] %vm69, %v36
    %80 = vst.msk [vmem:[#allocation2 + $0x50] sm:$0xff] %vm69, %v38
    %81 = vst.msk [vmem:[#allocation2 + $0x58] sm:$0xff] %vm69, %v40
    %82 = vst.msk [vmem:[#allocation2 + $0x60] sm:$0xff] %vm69, %v42
    %83 = vst.msk [vmem:[#allocation2 + $0x68] sm:$0xff] %vm69, %v44
    %84 = vst.msk [vmem:[#allocation2 + $0x70] sm:$0xff] %vm69, %v46
    %85 = vst.msk [vmem:[#allocation2 + $0x78] sm:$0xff] %vm69, %v48
    %vm118 = vcmask 1046528
    %v119 = vrot.slane %v16, 1
    %v120 = vrot.slane %v17, 1
    %v121 = vsel %vm118, %v119, %v120
    %v122 = vrot.slane %v18, 1
    %v123 = vrot.slane %v19, 1
    %v124 = vsel %vm118, %v122, %v123
    %v125 = vrot.slane %v20, 1
    %v126 = vrot.slane %v21, 1
    %v127 = vsel %vm118, %v125, %v126
    %v128 = vrot.slane %v22, 1
    %v129 = vrot.slane %v23, 1
    %v130 = vsel %vm118, %v128, %v129
    %v131 = vrot.slane %v24, 1
    %v132 = vrot.slane %v25, 1
    %v133 = vsel %vm118, %v131, %v132
    %v134 = vrot.slane %v26, 1
    %v135 = vrot.slane %v27, 1
    %v136 = vsel %vm118, %v134, %v135
    %v137 = vrot.slane %v28, 1
    %v138 = vrot.slane %v29, 1
    %v139 = vsel %vm118, %v137, %v138
    %v140 = vrot.slane %v30, 1
    %v141 = vrot.slane %v31, 1
    %v142 = vsel %vm118, %v140, %v141
    %v143 = vrot.slane %v34, 1
    %v144 = vrot.slane %v35, 1
    %v145 = vsel %vm118, %v143, %v144
    %v146 = vrot.slane %v36, 1
    %v147 = vrot.slane %v37, 1
    %v148 = vsel %vm118, %v146, %v147
    %v149 = vrot.slane %v38, 1
    %v150 = vrot.slane %v39, 1
    %v151 = vsel %vm118, %v149, %v150
    %v152 = vrot.slane %v40, 1
    %v153 = vrot.slane %v41, 1
    %v154 = vsel %vm118, %v152, %v153
    %v155 = vrot.slane %v42, 1
    %v156 = vrot.slane %v43, 1
    %v157 = vsel %vm118, %v155, %v156
    %v158 = vrot.slane %v44, 1
    %v159 = vrot.slane %v45, 1
    %v160 = vsel %vm118, %v158, %v159
    %v161 = vrot.slane %v46, 1
    %v162 = vrot.slane %v47, 1
    %v163 = vsel %vm118, %v161, %v162
    %v164 = vrot.slane %v48, 1
    %v165 = vrot.slane %v49, 1
    %v166 = vsel %vm118, %v164, %v165
    %167 = vrot.lane.b32.xlu0 %v121, 8
    %v168 = vpop.permute.xlu0 %167
    %169 = vrot.lane.b32.xlu0 %v124, 8
    %v170 = vpop.permute.xlu0 %169
    %171 = vrot.lane.b32.xlu0 %v127, 8
    %v172 = vpop.permute.xlu0 %171
    %173 = vrot.lane.b32.xlu0 %v130, 8
    %v174 = vpop.permute.xlu0 %173
    %175 = vrot.lane.b32.xlu0 %v133, 8
    %v176 = vpop.permute.xlu0 %175
    %177 = vrot.lane.b32.xlu0 %v136, 8
    %v178 = vpop.permute.xlu0 %177
    %179 = vrot.lane.b32.xlu0 %v139, 8
    %v180 = vpop.permute.xlu0 %179
    %181 = vrot.lane.b32.xlu0 %v142, 8
    %v182 = vpop.permute.xlu0 %181
    %183 = vrot.lane.b32.xlu0 %v145, 8
    %v184 = vpop.permute.xlu0 %183
    %185 = vrot.lane.b32.xlu0 %v148, 8
    %v186 = vpop.permute.xlu0 %185
    %187 = vrot.lane.b32.xlu0 %v151, 8
    %v188 = vpop.permute.xlu0 %187
    %189 = vrot.lane.b32.xlu0 %v154, 8
    %v190 = vpop.permute.xlu0 %189
    %191 = vrot.lane.b32.xlu0 %v157, 8
    %v192 = vpop.permute.xlu0 %191
    %193 = vrot.lane.b32.xlu0 %v160, 8
    %v194 = vpop.permute.xlu0 %193
    %195 = vrot.lane.b32.xlu0 %v163, 8
    %v196 = vpop.permute.xlu0 %195
    %197 = vrot.lane.b32.xlu0 %v166, 8
    %v198 = vpop.permute.xlu0 %197
    %vm215 = vcmask 97344
    %216 = vst.msk [vmem:[#allocation2] sm:$0xff] %vm215, %v168
    %217 = vst.msk [vmem:[#allocation2 + $0x8] sm:$0xff] %vm215, %v170
    %218 = vst.msk [vmem:[#allocation2 + $0x10] sm:$0xff] %vm215, %v172
    %219 = vst.msk [vmem:[#allocation2 + $0x18] sm:$0xff] %vm215, %v174
    %220 = vst.msk [vmem:[#allocation2 + $0x20] sm:$0xff] %vm215, %v176
    %221 = vst.msk [vmem:[#allocation2 + $0x28] sm:$0xff] %vm215, %v178
    %222 = vst.msk [vmem:[#allocation2 + $0x30] sm:$0xff] %vm215, %v180
    %223 = vst.msk [vmem:[#allocation2 + $0x38] sm:$0xff] %vm215, %v182
    %224 = vst.msk [vmem:[#allocation2 + $0x40] sm:$0xff] %vm215, %v184
    %225 = vst.msk [vmem:[#allocation2 + $0x48] sm:$0xff] %vm215, %v186
    %226 = vst.msk [vmem:[#allocation2 + $0x50] sm:$0xff] %vm215, %v188
    %227 = vst.msk [vmem:[#allocation2 + $0x58] sm:$0xff] %vm215, %v190
    %228 = vst.msk [vmem:[#allocation2 + $0x60] sm:$0xff] %vm215, %v192
    %229 = vst.msk [vmem:[#allocation2 + $0x68] sm:$0xff] %vm215, %v194
    %230 = vst.msk [vmem:[#allocation2 + $0x70] sm:$0xff] %vm215, %v196
    %231 = vst.msk [vmem:[#allocation2 + $0x78] sm:$0xff] %vm215, %v198
    %232 = vrot.lane.b32.xlu0 %v16, 4
    %v233 = vpop.permute.xlu0 %232
    %234 = vrot.lane.b32.xlu0 %v18, 4
    %v235 = vpop.permute.xlu0 %234
    %236 = vrot.lane.b32.xlu0 %v20, 4
    %v237 = vpop.permute.xlu0 %236
    %238 = vrot.lane.b32.xlu0 %v22, 4
    %v239 = vpop.permute.xlu0 %238
    %240 = vrot.lane.b32.xlu0 %v24, 4
    %v241 = vpop.permute.xlu0 %240
    %242 = vrot.lane.b32.xlu0 %v26, 4
    %v243 = vpop.permute.xlu0 %242
    %244 = vrot.lane.b32.xlu0 %v28, 4
    %v245 = vpop.permute.xlu0 %244
    %246 = vrot.lane.b32.xlu0 %v30, 4
    %v247 = vpop.permute.xlu0 %246
    %248 = vrot.lane.b32.xlu0 %v34, 4
    %v249 = vpop.permute.xlu0 %248
    %250 = vrot.lane.b32.xlu0 %v36, 4
    %v251 = vpop.permute.xlu0 %250
    %252 = vrot.lane.b32.xlu0 %v38, 4
    %v253 = vpop.permute.xlu0 %252
    %254 = vrot.lane.b32.xlu0 %v40, 4
    %v255 = vpop.permute.xlu0 %254
    %256 = vrot.lane.b32.xlu0 %v42, 4
    %v257 = vpop.permute.xlu0 %256
    %258 = vrot.lane.b32.xlu0 %v44, 4
    %v259 = vpop.permute.xlu0 %258
    %260 = vrot.lane.b32.xlu0 %v46, 4
    %v261 = vpop.permute.xlu0 %260
    %262 = vrot.lane.b32.xlu0 %v48, 4
    %v263 = vpop.permute.xlu0 %262
    %vm280 = vcmask 130144
    %281 = vst.msk [vmem:[#allocation2] sm:$0xff] %vm280, %v233
    %282 = vst.msk [vmem:[#allocation2 + $0x8] sm:$0xff] %vm280, %v235
    %283 = vst.msk [vmem:[#allocation2 + $0x10] sm:$0xff] %vm280, %v237
    %284 = vst.msk [vmem:[#allocation2 + $0x18] sm:$0xff] %vm280, %v239
    %285 = vst.msk [vmem:[#allocation2 + $0x20] sm:$0xff] %vm280, %v241
    %286 = vst.msk [vmem:[#allocation2 + $0x28] sm:$0xff] %vm280, %v243
    %287 = vst.msk [vmem:[#allocation2 + $0x30] sm:$0xff] %vm280, %v245
    %288 = vst.msk [vmem:[#allocation2 + $0x38] sm:$0xff] %vm280, %v247
    %289 = vst.msk [vmem:[#allocation2 + $0x40] sm:$0xff] %vm280, %v249
    %290 = vst.msk [vmem:[#allocation2 + $0x48] sm:$0xff] %vm280, %v251
    %291 = vst.msk [vmem:[#allocation2 + $0x50] sm:$0xff] %vm280, %v253
    %292 = vst.msk [vmem:[#allocation2 + $0x58] sm:$0xff] %vm280, %v255
    %293 = vst.msk [vmem:[#allocation2 + $0x60] sm:$0xff] %vm280, %v257
    %294 = vst.msk [vmem:[#allocation2 + $0x68] sm:$0xff] %vm280, %v259
    %295 = vst.msk [vmem:[#allocation2 + $0x70] sm:$0xff] %vm280, %v261
    %296 = vst.msk [vmem:[#allocation2 + $0x78] sm:$0xff] %vm280, %v263
    %vm297 = vcmask 162944
    %298 = vst.msk [vmem:[#allocation2] sm:$0xff] %vm297, %v233
    %299 = vst.msk [vmem:[#allocation2 + $0x8] sm:$0xff] %vm297, %v235
    %300 = vst.msk [vmem:[#allocation2 + $0x10] sm:$0xff] %vm297, %v237
    %301 = vst.msk [vmem:[#allocation2 + $0x18] sm:$0xff] %vm297, %v239
    %302 = vst.msk [vmem:[#allocation2 + $0x20] sm:$0xff] %vm297, %v241
    %303 = vst.msk [vmem:[#allocation2 + $0x28] sm:$0xff] %vm297, %v243
    %304 = vst.msk [vmem:[#allocation2 + $0x30] sm:$0xff] %vm297, %v245
    %305 = vst.msk [vmem:[#allocation2 + $0x38] sm:$0xff] %vm297, %v247
    %306 = vst.msk [vmem:[#allocation2 + $0x40] sm:$0xff] %vm297, %v249
    %307 = vst.msk [vmem:[#allocation2 + $0x48] sm:$0xff] %vm297, %v251
    %308 = vst.msk [vmem:[#allocation2 + $0x50] sm:$0xff] %vm297, %v253
    %309 = vst.msk [vmem:[#allocation2 + $0x58] sm:$0xff] %vm297, %v255
    %310 = vst.msk [vmem:[#allocation2 + $0x60] sm:$0xff] %vm297, %v257
    %311 = vst.msk [vmem:[#allocation2 + $0x68] sm:$0xff] %vm297, %v259
    %312 = vst.msk [vmem:[#allocation2 + $0x70] sm:$0xff] %vm297, %v261
    %313 = vst.msk [vmem:[#allocation2 + $0x78] sm:$0xff] %vm297, %v263
    %314 = vrot.lane.b32.xlu0 %v121, 12
    %v315 = vpop.permute.xlu0 %314
    %316 = vrot.lane.b32.xlu0 %v124, 12
    %v317 = vpop.permute.xlu0 %316
    %318 = vrot.lane.b32.xlu0 %v127, 12
    %v319 = vpop.permute.xlu0 %318
    %320 = vrot.lane.b32.xlu0 %v130, 12
    %v321 = vpop.permute.xlu0 %320
    %322 = vrot.lane.b32.xlu0 %v133, 12
    %v323 = vpop.permute.xlu0 %322
    %324 = vrot.lane.b32.xlu0 %v136, 12
    %v325 = vpop.permute.xlu0 %324
    %326 = vrot.lane.b32.xlu0 %v139, 12
    %v327 = vpop.permute.xlu0 %326
    %328 = vrot.lane.b32.xlu0 %v142, 12
    %v329 = vpop.permute.xlu0 %328
    %330 = vrot.lane.b32.xlu0 %v145, 12
    %v331 = vpop.permute.xlu0 %330
    %332 = vrot.lane.b32.xlu0 %v148, 12
    %v333 = vpop.permute.xlu0 %332
    %334 = vrot.lane.b32.xlu0 %v151, 12
    %v335 = vpop.permute.xlu0 %334
    %336 = vrot.lane.b32.xlu0 %v154, 12
    %v337 = vpop.permute.xlu0 %336
    %338 = vrot.lane.b32.xlu0 %v157, 12
    %v339 = vpop.permute.xlu0 %338
    %340 = vrot.lane.b32.xlu0 %v160, 12
    %v341 = vpop.permute.xlu0 %340
    %342 = vrot.lane.b32.xlu0 %v163, 12
    %v343 = vpop.permute.xlu0 %342
    %344 = vrot.lane.b32.xlu0 %v166, 12
    %v345 = vpop.permute.xlu0 %344
    %vm362 = vcmask 195744
    %363 = vst.msk [vmem:[#allocation2] sm:$0xff] %vm362, %v315
    %364 = vst.msk [vmem:[#allocation2 + $0x8] sm:$0xff] %vm362, %v317
    %365 = vst.msk [vmem:[#allocation2 + $0x10] sm:$0xff] %vm362, %v319
    %366 = vst.msk [vmem:[#allocation2 + $0x18] sm:$0xff] %vm362, %v321
    %367 = vst.msk [vmem:[#allocation2 + $0x20] sm:$0xff] %vm362, %v323
    %368 = vst.msk [vmem:[#allocation2 + $0x28] sm:$0xff] %vm362, %v325
    %369 = vst.msk [vmem:[#allocation2 + $0x30] sm:$0xff] %vm362, %v327
    %370 = vst.msk [vmem:[#allocation2 + $0x38] sm:$0xff] %vm362, %v329
    %371 = vst.msk [vmem:[#allocation2 + $0x40] sm:$0xff] %vm362, %v331
    %372 = vst.msk [vmem:[#allocation2 + $0x48] sm:$0xff] %vm362, %v333
    %373 = vst.msk [vmem:[#allocation2 + $0x50] sm:$0xff] %vm362, %v335
    %374 = vst.msk [vmem:[#allocation2 + $0x58] sm:$0xff] %vm362, %v337
    %375 = vst.msk [vmem:[#allocation2 + $0x60] sm:$0xff] %vm362, %v339
    %376 = vst.msk [vmem:[#allocation2 + $0x68] sm:$0xff] %vm362, %v341
    %377 = vst.msk [vmem:[#allocation2 + $0x70] sm:$0xff] %vm362, %v343
    %378 = vst.msk [vmem:[#allocation2 + $0x78] sm:$0xff] %vm362, %v345
    %381 = vrot.lane.b32.xlu0 %v18, 24
    %v382 = vpop.permute.xlu0 %381
    %383 = vrot.lane.b32.xlu0 %v20, 24
    %v384 = vpop.permute.xlu0 %383
    %385 = vrot.lane.b32.xlu0 %v22, 24
    %v386 = vpop.permute.xlu0 %385
    %387 = vrot.lane.b32.xlu0 %v24, 24
    %v388 = vpop.permute.xlu0 %387
    %389 = vrot.lane.b32.xlu0 %v26, 24
    %v390 = vpop.permute.xlu0 %389
    %391 = vrot.lane.b32.xlu0 %v28, 24
    %v392 = vpop.permute.xlu0 %391
    %393 = vrot.lane.b32.xlu0 %v30, 24
    %v394 = vpop.permute.xlu0 %393
    %395 = vrot.lane.b32.xlu0 %v32, 24
    %v396 = vpop.permute.xlu0 %395
    %397 = vrot.lane.b32.xlu0 %v36, 24
    %v398 = vpop.permute.xlu0 %397
    %399 = vrot.lane.b32.xlu0 %v38, 24
    %v400 = vpop.permute.xlu0 %399
    %401 = vrot.lane.b32.xlu0 %v40, 24
    %v402 = vpop.permute.xlu0 %401
    %403 = vrot.lane.b32.xlu0 %v42, 24
    %v404 = vpop.permute.xlu0 %403
    %405 = vrot.lane.b32.xlu0 %v44, 24
    %v406 = vpop.permute.xlu0 %405
    %407 = vrot.lane.b32.xlu0 %v46, 24
    %v408 = vpop.permute.xlu0 %407
    %409 = vrot.lane.b32.xlu0 %v48, 24
    %v410 = vpop.permute.xlu0 %409
    %411 = vrot.lane.b32.xlu0 %v50, 24
    %v412 = vpop.permute.xlu0 %411
    %vm429 = vcmask 228544
    %430 = vst.msk [vmem:[#allocation2] sm:$0xff] %vm429, %v382
    %431 = vst.msk [vmem:[#allocation2 + $0x8] sm:$0xff] %vm429, %v384
    %432 = vst.msk [vmem:[#allocation2 + $0x10] sm:$0xff] %vm429, %v386
    %433 = vst.msk [vmem:[#allocation2 + $0x18] sm:$0xff] %vm429, %v388
    %434 = vst.msk [vmem:[#allocation2 + $0x20] sm:$0xff] %vm429, %v390
    %435 = vst.msk [vmem:[#allocation2 + $0x28] sm:$0xff] %vm429, %v392
    %436 = vst.msk [vmem:[#allocation2 + $0x30] sm:$0xff] %vm429, %v394
    %437 = vst.msk [vmem:[#allocation2 + $0x38] sm:$0xff] %vm429, %v396
    %438 = vst.msk [vmem:[#allocation2 + $0x40] sm:$0xff] %vm429, %v398
    %439 = vst.msk [vmem:[#allocation2 + $0x48] sm:$0xff] %vm429, %v400
    %440 = vst.msk [vmem:[#allocation2 + $0x50] sm:$0xff] %vm429, %v402
    %441 = vst.msk [vmem:[#allocation2 + $0x58] sm:$0xff] %vm429, %v404
    %442 = vst.msk [vmem:[#allocation2 + $0x60] sm:$0xff] %vm429, %v406
    %443 = vst.msk [vmem:[#allocation2 + $0x68] sm:$0xff] %vm429, %v408
    %444 = vst.msk [vmem:[#allocation2 + $0x70] sm:$0xff] %vm429, %v410
    %445 = vst.msk [vmem:[#allocation2 + $0x78] sm:$0xff] %vm429, %v412
    %vm446 = vcmask 261344
    %447 = vst.msk [vmem:[#allocation2] sm:$0xff] %vm446, %v382
    %448 = vst.msk [vmem:[#allocation2 + $0x8] sm:$0xff] %vm446, %v384
    %449 = vst.msk [vmem:[#allocation2 + $0x10] sm:$0xff] %vm446, %v386
    %450 = vst.msk [vmem:[#allocation2 + $0x18] sm:$0xff] %vm446, %v388
    %451 = vst.msk [vmem:[#allocation2 + $0x20] sm:$0xff] %vm446, %v390
    %452 = vst.msk [vmem:[#allocation2 + $0x28] sm:$0xff] %vm446, %v392
    %453 = vst.msk [vmem:[#allocation2 + $0x30] sm:$0xff] %vm446, %v394
    %454 = vst.msk [vmem:[#allocation2 + $0x38] sm:$0xff] %vm446, %v396
    %455 = vst.msk [vmem:[#allocation2 + $0x40] sm:$0xff] %vm446, %v398
    %456 = vst.msk [vmem:[#allocation2 + $0x48] sm:$0xff] %vm446, %v400
    %457 = vst.msk [vmem:[#allocation2 + $0x50] sm:$0xff] %vm446, %v402
    %458 = vst.msk [vmem:[#allocation2 + $0x58] sm:$0xff] %vm446, %v404
    %459 = vst.msk [vmem:[#allocation2 + $0x60] sm:$0xff] %vm446, %v406
    %460 = vst.msk [vmem:[#allocation2 + $0x68] sm:$0xff] %vm446, %v408
    %461 = vst.msk [vmem:[#allocation2 + $0x70] sm:$0xff] %vm446, %v410
    %462 = vst.msk [vmem:[#allocation2 + $0x78] sm:$0xff] %vm446, %v412
    %v465 = vrot.slane %v32, 1
    %v466 = vrot.slane %v33, 1
    %v467 = vsel %vm118, %v465, %v466
    %v468 = vrot.slane %v50, 1
    %v469 = vrot.slane %v51, 1
    %v470 = vsel %vm118, %v468, %v469
    %471 = vrot.lane.b32.xlu0 %v124, 32
    %v472 = vpop.permute.xlu0 %471
    %473 = vrot.lane.b32.xlu0 %v127, 32
    %v474 = vpop.permute.xlu0 %473
    %475 = vrot.lane.b32.xlu0 %v130, 32
    %v476 = vpop.permute.xlu0 %475
    %477 = vrot.lane.b32.xlu0 %v133, 32
    %v478 = vpop.permute.xlu0 %477
    %479 = vrot.lane.b32.xlu0 %v136, 32
    %v480 = vpop.permute.xlu0 %479
    %481 = vrot.lane.b32.xlu0 %v139, 32
    %v482 = vpop.permute.xlu0 %481
    %483 = vrot.lane.b32.xlu0 %v142, 32
    %v484 = vpop.permute.xlu0 %483
    %485 = vrot.lane.b32.xlu0 %v467, 32
    %v486 = vpop.permute.xlu0 %485
    %487 = vrot.lane.b32.xlu0 %v148, 32
    %v488 = vpop.permute.xlu0 %487
    %489 = vrot.lane.b32.xlu0 %v151, 32
    %v490 = vpop.permute.xlu0 %489
    %491 = vrot.lane.b32.xlu0 %v154, 32
    %v492 = vpop.permute.xlu0 %491
    %493 = vrot.lane.b32.xlu0 %v157, 32
    %v494 = vpop.permute.xlu0 %493
    %495 = vrot.lane.b32.xlu0 %v160, 32
    %v496 = vpop.permute.xlu0 %495
    %497 = vrot.lane.b32.xlu0 %v163, 32
    %v498 = vpop.permute.xlu0 %497
    %499 = vrot.lane.b32.xlu0 %v166, 32
    %v500 = vpop.permute.xlu0 %499
    %501 = vrot.lane.b32.xlu0 %v470, 32
    %v502 = vpop.permute.xlu0 %501
    %vm519 = vcmask 294144
    %520 = vst.msk [vmem:[#allocation2] sm:$0xff] %vm519, %v472
    %521 = vst.msk [vmem:[#allocation2 + $0x8] sm:$0xff] %vm519, %v474
    %522 = vst.msk [vmem:[#allocation2 + $0x10] sm:$0xff] %vm519, %v476
    %523 = vst.msk [vmem:[#allocation2 + $0x18] sm:$0xff] %vm519, %v478
    %524 = vst.msk [vmem:[#allocation2 + $0x20] sm:$0xff] %vm519, %v480
    %525 = vst.msk [vmem:[#allocation2 + $0x28] sm:$0xff] %vm519, %v482
    %526 = vst.msk [vmem:[#allocation2 + $0x30] sm:$0xff] %vm519, %v484
    %527 = vst.msk [vmem:[#allocation2 + $0x38] sm:$0xff] %vm519, %v486
    %528 = vst.msk [vmem:[#allocation2 + $0x40] sm:$0xff] %vm519, %v488
    %529 = vst.msk [vmem:[#allocation2 + $0x48] sm:$0xff] %vm519, %v490
    %530 = vst.msk [vmem:[#allocation2 + $0x50] sm:$0xff] %vm519, %v492
    %531 = vst.msk [vmem:[#allocation2 + $0x58] sm:$0xff] %vm519, %v494
    %532 = vst.msk [vmem:[#allocation2 + $0x60] sm:$0xff] %vm519, %v496
    %533 = vst.msk [vmem:[#allocation2 + $0x68] sm:$0xff] %vm519, %v498
    %534 = vst.msk [vmem:[#allocation2 + $0x70] sm:$0xff] %vm519, %v500
    %535 = vst.msk [vmem:[#allocation2 + $0x78] sm:$0xff] %vm519, %v502
    %v536 = vld [vmem:[#allocation2] sm:$0xff]
    %v537 = vld [vmem:[#allocation2 + $0x8] sm:$0xff]
    %v538 = vld [vmem:[#allocation2 + $0x10] sm:$0xff]
    %v539 = vld [vmem:[#allocation2 + $0x18] sm:$0xff]
    %v540 = vld [vmem:[#allocation2 + $0x20] sm:$0xff]
    %v541 = vld [vmem:[#allocation2 + $0x28] sm:$0xff]
    %v542 = vld [vmem:[#allocation2 + $0x30] sm:$0xff]
    %v543 = vld [vmem:[#allocation2 + $0x38] sm:$0xff]
    %v544 = vld [vmem:[#allocation2 + $0x40] sm:$0xff]
    %v545 = vld [vmem:[#allocation2 + $0x48] sm:$0xff]
    %v546 = vld [vmem:[#allocation2 + $0x50] sm:$0xff]
    %v547 = vld [vmem:[#allocation2 + $0x58] sm:$0xff]
    %v548 = vld [vmem:[#allocation2 + $0x60] sm:$0xff]
    %v549 = vld [vmem:[#allocation2 + $0x68] sm:$0xff]
    %v550 = vld [vmem:[#allocation2 + $0x70] sm:$0xff]
    %v551 = vld [vmem:[#allocation2 + $0x78] sm:$0xff]
    %v552 = vld [vmem:[%s1] sm:$0xff]
    %v553 = vld [vmem:[%s1 + $0x8] sm:$0xff]
    %v554 = vld [vmem:[%s1 + $0x10] sm:$0xff]
    %v555 = vld [vmem:[%s1 + $0x18] sm:$0xff]
    %v556 = vld [vmem:[%s1 + $0x20] sm:$0xf]
    %vm557 = vcmask 293888
    %v559 = vsel %vm557, %v536, 0
    %v562 = vsel %vm557, %v537, 0
    %v565 = vsel %vm557, %v538, 0
    %v568 = vsel %vm557, %v539, 0
    %v571 = vsel %vm557, %v540, 0
    %v574 = vsel %vm557, %v541, 0
    %v577 = vsel %vm557, %v542, 0
    %v580 = vsel %vm557, %v543, 0
    %v583 = vsel %vm557, %v544, 0
    %v586 = vsel %vm557, %v545, 0
    %v589 = vsel %vm557, %v546, 0
    %v592 = vsel %vm557, %v547, 0
    %v595 = vsel %vm557, %v548, 0
    %v598 = vsel %vm557, %v549, 0
    %v601 = vsel %vm557, %v550, 0
    %v604 = vsel %vm557, %v551, 0
    %vm606 = vcmask 1043456
    %v608 = vsel %vm606, %v556, 0
    %610 = vmatprep.subr.mxu0 0.0
    %611 = vmatpush1.msra.mxu0 0.0
    %612 = vmatprep.subr.mxu0 0.0
    %613 = vmatpush1.msra.mxu0 0.0
    %614 = vmatprep.subr.mxu0 0.0
    %615 = vmatpush1.msra.mxu0 0.0
    %616 = vmatprep.subr.mxu0 0.0
    %617 = vmatpush1.msra.mxu0 0.0
    %618 = vmatprep.subr.mxu0 0.0
    %619 = vmatpush1.msra.mxu0 0.0
    %620 = vmatprep.subr.mxu0 0.0
    %621 = vmatpush1.msra.mxu0 0.0
    %622 = vmatprep.subr.mxu0 0.0
    %623 = vmatpush1.msra.mxu0 0.0
    %624 = vmatprep.subr.mxu0 0.0
    %625 = vmatpush1.msra.mxu0 0.0
    %626 = vmatprep.subr.mxu0 0.0
    %627 = vmatpush1.msra.mxu0 0.0
    %628 = vmatprep.subr.mxu0 0.0
    %629 = vmatpush1.msra.mxu0 0.0
    %630 = vmatprep.subr.mxu0 0.0
    %631 = vmatpush1.msra.mxu0 0.0
    %632 = vmatprep.subr.mxu0 0.0
    %633 = vmatpush1.msra.mxu0 %v608
    %634 = vmatprep.subr.mxu0 0.0
    %635 = vmatpush1.msra.mxu0 %v555
    %636 = vmatprep.subr.mxu0 0.0
    %637 = vmatpush1.msra.mxu0 %v554
    %638 = vmatprep.subr.mxu0 0.0
    %639 = vmatpush1.msra.mxu0 %v553
    %640 = vmatprep.subr.mxu0 0.0
    %641 = vmatpush1.msra.mxu0 %v552
    %642 = vmatprep.subr.mxu0 0.0
    %643 = vmatpush2.msra.mxu0 0.0
    %644 = vmatprep.subr.mxu0 0.0
    %645 = vmatpush2.msra.mxu0 0.0
    %646 = vmatprep.subr.mxu0 0.0
    %647 = vmatpush2.msra.mxu0 0.0
    %648 = vmatprep.subr.mxu0 0.0
    %649 = vmatpush2.msra.mxu0 0.0
    %650 = vmatprep.subr.mxu0 0.0
    %651 = vmatpush2.msra.mxu0 0.0
    %652 = vmatprep.subr.mxu0 0.0
    %653 = vmatpush2.msra.mxu0 0.0
    %654 = vmatprep.subr.mxu0 0.0
    %655 = vmatpush2.msra.mxu0 0.0
    %656 = vmatprep.subr.mxu0 0.0
    %657 = vmatpush2.msra.mxu0 0.0
    %658 = vmatprep.subr.mxu0 0.0
    %659 = vmatpush2.msra.mxu0 0.0
    %660 = vmatprep.subr.mxu0 0.0
    %661 = vmatpush2.msra.mxu0 0.0
    %662 = vmatprep.subr.mxu0 0.0
    %663 = vmatpush2.msra.mxu0 0.0
    %664 = vmatprep.subr.mxu0 0.0
    %665 = vmatpush2.msra.mxu0 0.0
    %666 = vmatprep.subr.mxu0 0.0
    %667 = vmatpush2.msra.mxu0 0.0
    %668 = vmatprep.subr.mxu0 0.0
    %669 = vmatpush2.msra.mxu0 0.0
    %670 = vmatprep.subr.mxu0 0.0
    %671 = vmatpush2.msra.mxu0 0.0
    %672 = vmatprep.subr.mxu0 0.0
    %673 = vmatpush2.msra.mxu0 0.0
    %674 = vmatprep.mubr.f32.mxu0 0.0
    %675 = vmatmul.mubr.f32.gmra.mxu0 %v559
    %v676 = vpop.f32.mrf.mxu0
    %v677 = vadd.f32 0.0, %v676
    %v678 = vpop.f32.mrf.mxu0
    %679 = vmatprep.mubr.f32.mxu0 0.0
    %680 = vmatmul.mubr.f32.gmra.mxu0 %v562
    %v681 = vpop.f32.mrf.mxu0
    %v682 = vadd.f32 0.0, %v681
    %v683 = vpop.f32.mrf.mxu0
    %684 = vmatprep.mubr.f32.mxu0 0.0
    %685 = vmatmul.mubr.f32.gmra.mxu0 %v565
    %v686 = vpop.f32.mrf.mxu0
    %v687 = vadd.f32 0.0, %v686
    %v688 = vpop.f32.mrf.mxu0
    %689 = vmatprep.mubr.f32.mxu0 0.0
    %690 = vmatmul.mubr.f32.gmra.mxu0 %v568
    %v691 = vpop.f32.mrf.mxu0
    %v692 = vadd.f32 0.0, %v691
    %v693 = vpop.f32.mrf.mxu0
    %694 = vmatprep.mubr.f32.mxu0 0.0
    %695 = vmatmul.mubr.f32.gmra.mxu0 %v571
    %v696 = vpop.f32.mrf.mxu0
    %v697 = vadd.f32 0.0, %v696
    %v698 = vpop.f32.mrf.mxu0
    %699 = vmatprep.mubr.f32.mxu0 0.0
    %700 = vmatmul.mubr.f32.gmra.mxu0 %v574
    %v701 = vpop.f32.mrf.mxu0
    %v702 = vadd.f32 0.0, %v701
    %v703 = vpop.f32.mrf.mxu0
    %704 = vmatprep.mubr.f32.mxu0 0.0
    %705 = vmatmul.mubr.f32.gmra.mxu0 %v577
    %v706 = vpop.f32.mrf.mxu0
    %v707 = vadd.f32 0.0, %v706
    %v708 = vpop.f32.mrf.mxu0
    %709 = vmatprep.mubr.f32.mxu0 0.0
    %710 = vmatmul.mubr.f32.gmra.mxu0 %v580
    %v711 = vpop.f32.mrf.mxu0
    %v712 = vadd.f32 0.0, %v711
    %v713 = vpop.f32.mrf.mxu0
    %714 = vmatprep.mubr.f32.mxu0 0.0
    %715 = vmatmul.mubr.f32.gmra.mxu0 %v583
    %v716 = vpop.f32.mrf.mxu0
    %v717 = vadd.f32 0.0, %v716
    %v718 = vpop.f32.mrf.mxu0
    %719 = vmatprep.mubr.f32.mxu0 0.0
    %720 = vmatmul.mubr.f32.gmra.mxu0 %v586
    %v721 = vpop.f32.mrf.mxu0
    %v722 = vadd.f32 0.0, %v721
    %v723 = vpop.f32.mrf.mxu0
    %724 = vmatprep.mubr.f32.mxu0 0.0
    %725 = vmatmul.mubr.f32.gmra.mxu0 %v589
    %v726 = vpop.f32.mrf.mxu0
    %v727 = vadd.f32 0.0, %v726
    %v728 = vpop.f32.mrf.mxu0
    %729 = vmatprep.mubr.f32.mxu0 0.0
    %730 = vmatmul.mubr.f32.gmra.mxu0 %v592
    %v731 = vpop.f32.mrf.mxu0
    %v732 = vadd.f32 0.0, %v731
    %v733 = vpop.f32.mrf.mxu0
    %734 = vmatprep.mubr.f32.mxu0 0.0
    %735 = vmatmul.mubr.f32.gmra.mxu0 %v595
    %v736 = vpop.f32.mrf.mxu0
    %v737 = vadd.f32 0.0, %v736
    %v738 = vpop.f32.mrf.mxu0
    %739 = vmatprep.mubr.f32.mxu0 0.0
    %740 = vmatmul.mubr.f32.gmra.mxu0 %v598
    %v741 = vpop.f32.mrf.mxu0
    %v742 = vadd.f32 0.0, %v741
    %v743 = vpop.f32.mrf.mxu0
    %744 = vmatprep.mubr.f32.mxu0 0.0
    %745 = vmatmul.mubr.f32.gmra.mxu0 %v601
    %v746 = vpop.f32.mrf.mxu0
    %v747 = vadd.f32 0.0, %v746
    %v748 = vpop.f32.mrf.mxu0
    %749 = vmatprep.mubr.f32.mxu0 0.0
    %750 = vmatmul.mubr.f32.gmra.mxu0 %v604
    %v751 = vpop.f32.mrf.mxu0
    %v752 = vadd.f32 0.0, %v751
    %v753 = vpop.f32.mrf.mxu0
    %754 = vdwg.mxu0
    %vm755 = vcmask 64512
    %756 = vst.msk [vmem:[#allocation3] sm:$0xff] %vm755, %v677
    %757 = vst.msk [vmem:[#allocation3 + $0x8] sm:$0xff] %vm755, %v682
    %758 = vst.msk [vmem:[#allocation3 + $0x10] sm:$0xff] %vm755, %v687
    %759 = vst.msk [vmem:[#allocation3 + $0x18] sm:$0xff] %vm755, %v692
    %760 = vst.msk [vmem:[#allocation3 + $0x20] sm:$0xff] %vm755, %v697
    %761 = vst.msk [vmem:[#allocation3 + $0x28] sm:$0xff] %vm755, %v702
    %762 = vst.msk [vmem:[#allocation3 + $0x30] sm:$0xff] %vm755, %v707
    %763 = vst.msk [vmem:[#allocation3 + $0x38] sm:$0xff] %vm755, %v712
    %764 = vst.msk [vmem:[#allocation3 + $0x40] sm:$0xff] %vm755, %v717
    %765 = vst.msk [vmem:[#allocation3 + $0x48] sm:$0xff] %vm755, %v722
    %766 = vst.msk [vmem:[#allocation3 + $0x50] sm:$0xff] %vm755, %v727
    %767 = vst.msk [vmem:[#allocation3 + $0x58] sm:$0xff] %vm755, %v732
    %768 = vst.msk [vmem:[#allocation3 + $0x60] sm:$0xff] %vm755, %v737
    %769 = vst.msk [vmem:[#allocation3 + $0x68] sm:$0xff] %vm755, %v742
    %770 = vst.msk [vmem:[#allocation3 + $0x70] sm:$0xff] %vm755, %v747
    %771 = vst.msk [vmem:[#allocation3 + $0x78] sm:$0xff] %vm755, %v752
    %v772 = vsel %vm755, %v677, 0.0
    %v773 = vsel %vm755, %v682, 0.0
    %v774 = vadd.f32 %v772, %v773
    %v775 = vsel %vm755, %v687, 0.0
    %v776 = vadd.f32 %v774, %v775
    %v777 = vsel %vm755, %v692, 0.0
    %v778 = vadd.f32 %v776, %v777
    %v779 = vsel %vm755, %v697, 0.0
    %v780 = vadd.f32 %v778, %v779
    %v781 = vsel %vm755, %v702, 0.0
    %v782 = vadd.f32 %v780, %v781
    %v783 = vsel %vm755, %v707, 0.0
    %v784 = vadd.f32 %v782, %v783
    %v785 = vsel %vm755, %v712, 0.0
    %v786 = vadd.f32 %v784, %v785
    %v787 = vsel %vm755, %v717, 0.0
    %v788 = vadd.f32 %v786, %v787
    %v789 = vsel %vm755, %v722, 0.0
    %v790 = vadd.f32 %v788, %v789
    %v791 = vsel %vm755, %v727, 0.0
    %v792 = vadd.f32 %v790, %v791
    %v793 = vsel %vm755, %v732, 0.0
    %v794 = vadd.f32 %v792, %v793
    %v795 = vsel %vm755, %v737, 0.0
    %v796 = vadd.f32 %v794, %v795
    %v797 = vsel %vm755, %v742, 0.0
    %v798 = vadd.f32 %v796, %v797
    %v799 = vsel %vm755, %v747, 0.0
    %v800 = vadd.f32 %v798, %v799
    %v801 = vsel %vm755, %v752, 0.0
    %v802 = vadd.f32 %v800, %v801
    %v803 = vrot.slane %v802, 4
    %v804 = vadd.f32 %v802, %v803
    %v805 = vrot.slane %v804, 2
    %v806 = vadd.f32 %v804, %v805
    %v807 = vrot.slane %v806, 1
    %v808 = vadd.f32 %v806, %v807
    %vm809 = vcmask 57344
    %810 = vst.msk [vmem:[#allocation5] sm:$0x1] %vm809, %v808
    %v811 = vmul.f32 %v677, %v677
    %v812 = vmul.f32 %v682, %v682
    %v813 = vmul.f32 %v687, %v687
    %v814 = vmul.f32 %v692, %v692
    %v815 = vmul.f32 %v697, %v697
    %v816 = vmul.f32 %v702, %v702
    %v817 = vmul.f32 %v707, %v707
    %v818 = vmul.f32 %v712, %v712
    %v819 = vmul.f32 %v717, %v717
    %v820 = vmul.f32 %v722, %v722
    %v821 = vmul.f32 %v727, %v727
    %v822 = vmul.f32 %v732, %v732
    %v823 = vmul.f32 %v737, %v737
    %v824 = vmul.f32 %v742, %v742
    %v825 = vmul.f32 %v747, %v747
    %v826 = vmul.f32 %v752, %v752
    %v827 = vsel %vm755, %v811, 0.0
    %v828 = vsel %vm755, %v812, 0.0
    %v829 = vadd.f32 %v827, %v828
    %v830 = vsel %vm755, %v813, 0.0
    %v831 = vadd.f32 %v829, %v830
    %v832 = vsel %vm755, %v814, 0.0
    %v833 = vadd.f32 %v831, %v832
    %v834 = vsel %vm755, %v815, 0.0
    %v835 = vadd.f32 %v833, %v834
    %v836 = vsel %vm755, %v816, 0.0
    %v837 = vadd.f32 %v835, %v836
    %v838 = vsel %vm755, %v817, 0.0
    %v839 = vadd.f32 %v837, %v838
    %v840 = vsel %vm755, %v818, 0.0
    %v841 = vadd.f32 %v839, %v840
    %v842 = vsel %vm755, %v819, 0.0
    %v843 = vadd.f32 %v841, %v842
    %v844 = vsel %vm755, %v820, 0.0
    %v845 = vadd.f32 %v843, %v844
    %v846 = vsel %vm755, %v821, 0.0
    %v847 = vadd.f32 %v845, %v846
    %v848 = vsel %vm755, %v822, 0.0
    %v849 = vadd.f32 %v847, %v848
    %v850 = vsel %vm755, %v823, 0.0
    %v851 = vadd.f32 %v849, %v850
    %v852 = vsel %vm755, %v824, 0.0
    %v853 = vadd.f32 %v851, %v852
    %v854 = vsel %vm755, %v825, 0.0
    %v855 = vadd.f32 %v853, %v854
    %v856 = vsel %vm755, %v826, 0.0
    %v857 = vadd.f32 %v855, %v856
    %v858 = vrot.slane %v857, 4
    %v859 = vadd.f32 %v857, %v858
    %v860 = vrot.slane %v859, 2
    %v861 = vadd.f32 %v859, %v860
    %v862 = vrot.slane %v861, 1
    %v863 = vadd.f32 %v861, %v862
    %864 = vst.msk [vmem:[#allocation7] sm:$0x1] %vm809, %v863
    // Predicated region
    $region10: #{tpu_custom_call.1} parent=1 // pred_check
      _
    $region11: #{tpu_custom_call.1} parent=1 // pred_check_branch
      %866 = sbr.rel (0) target = $region13
    $region12: #{tpu_custom_call.1} parent=1 // pred_region
      %s868 = ssub.s32 2048, 2048
      %869 = vsyncadd [#allocation4], %s868
      %s870 = sshll.u32 [#allocation3], 4
      %s871 = int_to_ptr.vmem [resolvable:$true] %s870
      %876 = dma.vmem_to_hbm [thread:$0]  %s871, 2048, %s2, [#allocation4], 128, 128, 8
    $region13: #{tpu_custom_call.1} parent=1 // pred_fallthru
      _
    // Predicated region
    $region14: #{tpu_custom_call.1} parent=1 // pred_check
      _
    $region15: #{tpu_custom_call.1} parent=1 // pred_check_branch
      %878 = sbr.rel (0) target = $region17
    $region16: #{tpu_custom_call.1} parent=1 // pred_region
      %s880 = ssub.s32 16, 16
      %881 = vsyncadd [#allocation6], %s880
      %s883 = sshll.u32 [#allocation5], 4
      %s884 = int_to_ptr.vmem [resolvable:$true] %s883
      %886 = dma.vmem_to_hbm [thread:$0]  %s884, 16, %s3, [#allocation6]
    $region17: #{tpu_custom_call.1} parent=1 // pred_fallthru
      _
    // Predicated region
    $region18: #{tpu_custom_call.1} parent=1 // pred_check
      _
    $region19: #{tpu_custom_call.1} parent=1 // pred_check_branch
      %888 = sbr.rel (0) target = $region21
    $region20: #{tpu_custom_call.1} parent=1 // pred_region
      %s890 = ssub.s32 16, 16
      %891 = vsyncadd [#allocation6], %s890
      %s893 = sshll.u32 [#allocation7], 4
      %s894 = int_to_ptr.vmem [resolvable:$true] %s893
      %896 = dma.vmem_to_hbm [thread:$0]  %s894, 16, %s4, [#allocation6]
    $region21: #{tpu_custom_call.1} parent=1 // pred_fallthru
      _
    // Predicated region
    $region22: #{tpu_custom_call.1} parent=1 // pred_check
      _
    $region23: #{tpu_custom_call.1} parent=1 // pred_check_branch
      %898 = sbr.rel (0) target = $region25
    $region24: #{tpu_custom_call.1} parent=1 // pred_region
      %899 = dma.done [#allocation4], 2048
    $region25: #{tpu_custom_call.1} parent=1 // pred_fallthru
      _
    // Predicated region
    $region26: #{tpu_custom_call.1} parent=1 // pred_check
      _
    $region27: #{tpu_custom_call.1} parent=1 // pred_check_branch
      %901 = sbr.rel (0) target = $region29
    $region28: #{tpu_custom_call.1} parent=1 // pred_region
      %902 = dma.done [#allocation6], 16
    $region29: #{tpu_custom_call.1} parent=1 // pred_fallthru
      _
    // Predicated region
    $region30: #{tpu_custom_call.1} parent=1 // pred_check
      _
    $region31: #{tpu_custom_call.1} parent=1 // pred_check_branch
      %904 = sbr.rel (0) target = $region33
    $region32: #{tpu_custom_call.1} parent=1 // pred_region
      %905 = dma.done [#allocation6], 16
    $region33: #{tpu_custom_call.1} parent=1 // pred_fallthru
      _
    %906 = vsyncpa [#allocation4], 1
    %907 = vsyncpa [#allocation6], 1

</llo_original>
